<compile_context>
chip_gen: v7x
topology: tpu7x:2x2x1
jax: 0.10.0
libtpu: 0.0.40
codegen_flags: <defaults>
</compile_context>

<pallas_src>
import functools

import jax
import jax.numpy as jnp
from jax.experimental import pallas as pl
from jax.experimental.pallas import tpu as pltpu

_LANE = 128


def critic3_kernel(x_ref, w1_ref, b1_ref, w2_ref, b2_ref, w3_ref, b3_ref,
                   v_ref, *, act_dtype):
    # x_ref: [D, bb]  (batch on lanes),  w*: PyTorch-native [out, in] (bf16),
    # b*: [out, 1] f32,  v_ref: [1, bb] f32.
    x = x_ref[...]

    z1 = jnp.dot(w1_ref[...], x, preferred_element_type=jnp.float32) + b1_ref[...]
    h1 = jnp.tanh(z1.astype(act_dtype))                      # [H, bb]

    z2 = jnp.dot(w2_ref[...], h1, preferred_element_type=jnp.float32) + b2_ref[...]
    h2 = jnp.tanh(z2.astype(act_dtype))                      # [H, bb]

    v = jnp.dot(w3_ref[...], h2, preferred_element_type=jnp.float32) + b3_ref[...]
    v_ref[...] = v.astype(v_ref.dtype)                       # lane-dense [1, bb]


def critic3_forward(x, params, *, max_batch_block=8192, use_bf16_tanh=None):
    """x: [B, num_inputs] f32, params in PyTorch layout -> v: [B, 1] f32."""
    w1, b1, w2, b2, w3, b3 = params       # w: [out, in], b: [out]
    B, D = x.shape
    H = w1.shape[0]

    if use_bf16_tanh is None:
        kind = jax.devices()[0].device_kind.lower()
        # bf16 EUP only exists on v6e and newer; keep f32 tanh on v5e and older.
        use_bf16_tanh = not any(g in kind for g in ("v2", "v3", "v4", "v5"))
    act_dtype = jnp.bfloat16 if use_bf16_tanh else jnp.float32
    stream_dtype = jnp.bfloat16  # x / weight streaming dtype (f32 accumulation)

    # ---- batch tiling: pad to lane multiple, large tiles, prefer >= 2 steps ----
    b_pad = pl.cdiv(B, _LANE) * _LANE
    bb = min(b_pad, max_batch_block)
    if b_pad > _LANE and pl.cdiv(b_pad, bb) < 2:
        # keep at least 2 "parallel" grid steps so v7x can use both TensorCores
        bb = max(_LANE, pl.cdiv(b_pad // 2, _LANE) * _LANE)
    grid_n = pl.cdiv(b_pad, bb)
    b_total = grid_n * bb

    # Batch-on-lanes input: [D, b_total] bf16 (zero-pad the batch tail).
    xt = jnp.pad(x.astype(stream_dtype), ((0, b_total - B), (0, 0))).T

    w1c = w1.astype(stream_dtype)
    w2c = w2.astype(stream_dtype)
    w3c = w3.astype(stream_dtype)
    b1c = b1.reshape(H, 1).astype(jnp.float32)
    b2c = b2.reshape(H, 1).astype(jnp.float32)
    b3c = b3.reshape(1, 1).astype(jnp.float32)

    # Weights/biases are tiny: keep full tensors resident every grid step.
    # (pipeline_mode=pl.Buffered(1) would drop their second buffer; the VMEM
    #  saved here is a few KiB so we keep the default for robustness.)
    full = lambda shape: pl.BlockSpec(shape, lambda i: (0, 0))

    kernel = functools.partial(critic3_kernel, act_dtype=act_dtype)

    out = pl.pallas_call(
        kernel,
        out_shape=jax.ShapeDtypeStruct((1, b_total), jnp.float32),
        grid_spec=pltpu.PrefetchScalarGridSpec(
            num_scalar_prefetch=0,
            grid=(grid_n,),
            in_specs=[
                pl.BlockSpec((D, bb), lambda i: (0, i)),   # x tile (batch on lanes)
                full((H, D)),                              # w1
                full((H, 1)),                              # b1
                full((H, H)),                              # w2
                full((H, 1)),                              # b2
                full((1, H)),                              # w3
                full((1, 1)),                              # b3
            ],
            out_specs=pl.BlockSpec((1, bb), lambda i: (0, i)),  # lane-dense row
        ),
        compiler_params=pltpu.CompilerParams(
            dimension_semantics=("parallel",),
        ),
    )(xt, w1c, b1c, w2c, b2c, w3c, b3c)

    # Strip padding and return the PyTorch-shaped [B, 1] value.
    return out[0, :B].reshape(B, 1)


def init_params(key, num_inputs, hidden):
    """PyTorch nn.Linear-style init (uniform(-1/sqrt(fan_in), 1/sqrt(fan_in)))
    with the Critic3-specific fc3.weight *= 0.1 and fc3.bias *= 0.0 tweaks.
    Weights are kept in PyTorch-native [out_features, in_features] layout."""
    ks = jax.random.split(key, 6)

    def linear(kw, kb, fan_in, fan_out):
        bound = 1.0 / jnp.sqrt(jnp.float32(fan_in))
        w = jax.random.uniform(kw, (fan_out, fan_in), jnp.float32, -bound, bound)
        b = jax.random.uniform(kb, (fan_out,), jnp.float32, -bound, bound)
        return w, b

    w1, b1 = linear(ks[0], ks[1], num_inputs, hidden)
    w2, b2 = linear(ks[2], ks[3], hidden, hidden)
    w3, b3 = linear(ks[4], ks[5], hidden, 1)
    w3 = w3 * 0.1
    b3 = b3 * 0.0
    return (w1, b1, w2, b2, w3, b3)


def critic3_ref(x, params):
    w1, b1, w2, b2, w3, b3 = params
    h1 = jnp.tanh(x @ w1.T + b1)
    h2 = jnp.tanh(h1 @ w2.T + b2)
    return h2 @ w3.T + b3


if __name__ == "__main__":
    key = jax.random.PRNGKey(0)
    k_x, k_p = jax.random.split(key)

    batch, num_inputs, hidden = 8, 16, 32   # hp.critic_hidden1 = 32
    x = jax.random.normal(k_x, (batch, num_inputs), jnp.float32)
    params = init_params(k_p, num_inputs, hidden)

    v = critic3_forward(x, params)
    jax.block_until_ready(v)

    v_ref = critic3_ref(x, params)
    assert v.shape == (batch, 1)
    # bf16 streaming of x/weights -> relaxed tolerance vs the f32 reference.
    assert jnp.allclose(v, v_ref, atol=2e-2, rtol=2e-2), "mismatch vs JAX reference"

    print("KERNEL_OK")
</pallas_src>

<mosaic_0001>
module attributes {stable_mosaic.version = 11 : i64} {
  func.func @critic3_kernel(%arg0: i32, %arg1: memref<16x128xbf16, #tpu.memory_space<vmem>>, %arg2: memref<32x16xbf16, #tpu.memory_space<vmem>>, %arg3: memref<32x1xf32, #tpu.memory_space<vmem>>, %arg4: memref<32x32xbf16, #tpu.memory_space<vmem>>, %arg5: memref<32x1xf32, #tpu.memory_space<vmem>>, %arg6: memref<1x32xbf16, #tpu.memory_space<vmem>>, %arg7: memref<1x1xf32, #tpu.memory_space<vmem>>, %arg8: memref<1x128xf32, #tpu.memory_space<vmem>>) attributes {dimension_semantics = [#tpu.dimension_semantics<parallel>], iteration_bounds = array<i64: 1>, scalar_prefetch = 0 : i64, scratch_operands = 0 : i64, tpu.core_type = #tpu.core_type<tc>, window_params = [{transform_indices = @transform_0, window_bounds = array<i64: 16, 128>}, {pipeline_mode = #tpu.pipeline_mode<synchronous>, transform_indices = @transform_1, window_bounds = array<i64: 32, 16>}, {pipeline_mode = #tpu.pipeline_mode<synchronous>, transform_indices = @transform_2, window_bounds = array<i64: 32, 1>}, {pipeline_mode = #tpu.pipeline_mode<synchronous>, transform_indices = @transform_3, window_bounds = array<i64: 32, 32>}, {pipeline_mode = #tpu.pipeline_mode<synchronous>, transform_indices = @transform_4, window_bounds = array<i64: 32, 1>}, {pipeline_mode = #tpu.pipeline_mode<synchronous>, transform_indices = @transform_5, window_bounds = array<i64: 1, 32>}, {pipeline_mode = #tpu.pipeline_mode<synchronous>, transform_indices = @transform_6, window_bounds = array<i64: 1, 1>}, {transform_indices = @transform_7, window_bounds = array<i64: 1, 128>}]} {
    %c0 = arith.constant 0 : index
    %c0_0 = arith.constant 0 : index
    %0 = vector.load %arg1[%c0, %c0_0] : memref<16x128xbf16, #tpu.memory_space<vmem>>, vector<16x128xbf16>
    %c0_1 = arith.constant 0 : index
    %c0_2 = arith.constant 0 : index
    %1 = vector.load %arg2[%c0_1, %c0_2] : memref<32x16xbf16, #tpu.memory_space<vmem>>, vector<32x16xbf16>
    %cst = arith.constant dense<0.000000e+00> : vector<32x128xf32>
    %2 = tpu.matmul %1, %0, %cst {dimension_numbers = #tpu.dot_dimension_numbers<[1], [0], [0], [1], [0, 0, 1, 1], [], []>} : vector<32x16xbf16>, vector<16x128xbf16>, vector<32x128xf32> -> vector<32x128xf32>
    %c0_3 = arith.constant 0 : index
    %c0_4 = arith.constant 0 : index
    %3 = vector.load %arg3[%c0_3, %c0_4] : memref<32x1xf32, #tpu.memory_space<vmem>>, vector<32x1xf32>
    %4 = vector.broadcast %3 : vector<32x1xf32> to vector<32x128xf32>
    %5 = arith.addf %2, %4 : vector<32x128xf32>
    %6 = arith.truncf %5 : vector<32x128xf32> to vector<32x128xbf16>
    %7 = math.tanh %6 : vector<32x128xbf16>
    %c0_5 = arith.constant 0 : index
    %c0_6 = arith.constant 0 : index
    %8 = vector.load %arg4[%c0_5, %c0_6] : memref<32x32xbf16, #tpu.memory_space<vmem>>, vector<32x32xbf16>
    %cst_7 = arith.constant dense<0.000000e+00> : vector<32x128xf32>
    %9 = tpu.matmul %8, %7, %cst_7 {dimension_numbers = #tpu.dot_dimension_numbers<[1], [0], [0], [1], [0, 0, 1, 1], [], []>} : vector<32x32xbf16>, vector<32x128xbf16>, vector<32x128xf32> -> vector<32x128xf32>
    %c0_8 = arith.constant 0 : index
    %c0_9 = arith.constant 0 : index
    %10 = vector.load %arg5[%c0_8, %c0_9] : memref<32x1xf32, #tpu.memory_space<vmem>>, vector<32x1xf32>
    %11 = vector.broadcast %10 : vector<32x1xf32> to vector<32x128xf32>
    %12 = arith.addf %9, %11 : vector<32x128xf32>
    %13 = arith.truncf %12 : vector<32x128xf32> to vector<32x128xbf16>
    %14 = math.tanh %13 : vector<32x128xbf16>
    %c0_10 = arith.constant 0 : index
    %c0_11 = arith.constant 0 : index
    %15 = vector.load %arg6[%c0_10, %c0_11] : memref<1x32xbf16, #tpu.memory_space<vmem>>, vector<1x32xbf16>
    %cst_12 = arith.constant dense<0.000000e+00> : vector<1x128xf32>
    %16 = tpu.matmul %15, %14, %cst_12 {dimension_numbers = #tpu.dot_dimension_numbers<[1], [0], [0], [1], [0, 0, 1, 1], [], []>} : vector<1x32xbf16>, vector<32x128xbf16>, vector<1x128xf32> -> vector<1x128xf32>
    %c0_13 = arith.constant 0 : index
    %c0_14 = arith.constant 0 : index
    %17 = vector.load %arg7[%c0_13, %c0_14] : memref<1x1xf32, #tpu.memory_space<vmem>>, vector<1x1xf32>
    %18 = vector.broadcast %17 : vector<1x1xf32> to vector<1x128xf32>
    %19 = arith.addf %16, %18 : vector<1x128xf32>
    %c0_15 = arith.constant 0 : index
    %c0_16 = arith.constant 0 : index
    %20 = vector.load %arg8[%c0_15, %c0_16] : memref<1x128xf32, #tpu.memory_space<vmem>>, vector<1x128xf32>
    tpu.vector_store %arg8[%c0_15, %c0_16], %19 {strides = array<i32>} : memref<1x128xf32, #tpu.memory_space<vmem>>, vector<1x128xf32>,
    return
  }
  func.func @transform_0(%arg0: i32) -> (i32, i32) {
    %c0_i32 = arith.constant 0 : i32
    %c0_i32_0 = arith.constant 0 : i32
    return %c0_i32, %arg0 : i32, i32
  }
  func.func @transform_1(%arg0: i32) -> (i32, i32) {
    %c0_i32 = arith.constant 0 : i32
    %c0_i32_0 = arith.constant 0 : i32
    %c0_i32_1 = arith.constant 0 : i32
    return %c0_i32, %c0_i32_0 : i32, i32
  }
  func.func @transform_2(%arg0: i32) -> (i32, i32) {
    %c0_i32 = arith.constant 0 : i32
    %c0_i32_0 = arith.constant 0 : i32
    %c0_i32_1 = arith.constant 0 : i32
    return %c0_i32, %c0_i32_0 : i32, i32
  }
  func.func @transform_3(%arg0: i32) -> (i32, i32) {
    %c0_i32 = arith.constant 0 : i32
    %c0_i32_0 = arith.constant 0 : i32
    %c0_i32_1 = arith.constant 0 : i32
    return %c0_i32, %c0_i32_0 : i32, i32
  }
  func.func @transform_4(%arg0: i32) -> (i32, i32) {
    %c0_i32 = arith.constant 0 : i32
    %c0_i32_0 = arith.constant 0 : i32
    %c0_i32_1 = arith.constant 0 : i32
    return %c0_i32, %c0_i32_0 : i32, i32
  }
  func.func @transform_5(%arg0: i32) -> (i32, i32) {
    %c0_i32 = arith.constant 0 : i32
    %c0_i32_0 = arith.constant 0 : i32
    %c0_i32_1 = arith.constant 0 : i32
    return %c0_i32, %c0_i32_0 : i32, i32
  }
  func.func @transform_6(%arg0: i32) -> (i32, i32) {
    %c0_i32 = arith.constant 0 : i32
    %c0_i32_0 = arith.constant 0 : i32
    %c0_i32_1 = arith.constant 0 : i32
    return %c0_i32, %c0_i32_0 : i32, i32
  }
  func.func @transform_7(%arg0: i32) -> (i32, i32) {
    %c0_i32 = arith.constant 0 : i32
    %c0_i32_0 = arith.constant 0 : i32
    return %c0_i32, %arg0 : i32, i32
  }
}

</mosaic_0001>

<llo_original>
// kernel: tpu_custom_call.1
$region0: #{tpu_custom_call.1}
  #allocation0 [shape = 'u32[]', space=smem, size = 0x4, offset = 0x4, fixed_abs, tag = 'smem constant byte address 0x4 - core index']
  #allocation1 [shape = 'u32[144,128]{1,0:T(1,128)}', space=vmem, size = 0x12000, scoped, tag = 'internal scratch']
  #allocation2 [shape = 'f32[1,1]{1,0:T(1,128)S(1)}', space=vmem, size = 0x200, scoped, tag = 'scoped memory for tpu_custom_call.1']
  %s0 = inlined_call_operand.vmem [shape: bf16[16,128], index: 0, kind: input, shape index: {}]
  %s1 = inlined_call_operand.vmem [shape: bf16[32,16], index: 1, kind: input, shape index: {}]
  %s2 = inlined_call_operand.vmem [shape: f32[32,1], index: 2, kind: input, shape index: {}]
  %s3 = inlined_call_operand.vmem [shape: bf16[32,32], index: 3, kind: input, shape index: {}]
  %s4 = inlined_call_operand.vmem [shape: f32[32,1], index: 4, kind: input, shape index: {}]
  %s5 = inlined_call_operand.vmem [shape: bf16[1,32], index: 5, kind: input, shape index: {}]
  %s6 = inlined_call_operand.<no memory space> [shape: f32[1,1], index: 6, kind: input, shape index: {}]
  %s7 = inlined_call_operand.hbm [shape: f32[1,128], index: 7, kind: output, shape index: {}]
  %s8 = sld [smem:[#allocation0]]
  $region38: #{tpu_custom_call.1} parent=0
    _
  %s10 = ssub.s32 1, %s8
  %s11 = scalar_select 0, %s10, %s8
  %v12 = vstv %s6
  %13 = vst [vmem:[#allocation2] sm:$0x1] %v12
  $region1: #{tpu_custom_call.1} parent=0
    #allocation3 [shape = 'u8[512]{0}', space=vmem, size = 0x400, scoped, tag = 'output window, operand 0, single buffered']
    #allocation4 [shape = 's32[1]{0}', space=sflag, size = 0x4, scoped, tag = 'scoped memory for tpu_custom_call.1']
    %14 = vsyncpa [#allocation4], 0
    // Predicated region
    $region2: #{tpu_custom_call.1} parent=1 // pred_check
      _
    $region3: #{tpu_custom_call.1} parent=1 // pred_check_branch
      %16 = sbr.rel (0) target = $region5
    $region4: #{tpu_custom_call.1} parent=1 // pred_region
      _
    $region5: #{tpu_custom_call.1} parent=1 // pred_fallthru
      _
    // Predicated region
    $region6: #{tpu_custom_call.1} parent=1 // pred_check
      _
    $region7: #{tpu_custom_call.1} parent=1 // pred_check_branch
      %18 = sbr.rel (0) target = $region9
    $region8: #{tpu_custom_call.1} parent=1 // pred_region
      _
    $region9: #{tpu_custom_call.1} parent=1 // pred_fallthru
      _
    // Predicated region
    $region10: #{tpu_custom_call.1} parent=1 // pred_check
      _
    $region11: #{tpu_custom_call.1} parent=1 // pred_check_branch
      %20 = sbr.rel (0) target = $region13
    $region12: #{tpu_custom_call.1} parent=1 // pred_region
      _
    $region13: #{tpu_custom_call.1} parent=1 // pred_fallthru
      _
    // Predicated region
    $region14: #{tpu_custom_call.1} parent=1 // pred_check
      _
    $region15: #{tpu_custom_call.1} parent=1 // pred_check_branch
      %22 = sbr.rel (0) target = $region17
    $region16: #{tpu_custom_call.1} parent=1 // pred_region
      _
    $region17: #{tpu_custom_call.1} parent=1 // pred_fallthru
      _
    // Predicated region
    $region18: #{tpu_custom_call.1} parent=1 // pred_check
      _
    $region19: #{tpu_custom_call.1} parent=1 // pred_check_branch
      %24 = sbr.rel (0) target = $region21
    $region20: #{tpu_custom_call.1} parent=1 // pred_region
      _
    $region21: #{tpu_custom_call.1} parent=1 // pred_fallthru
      _
    // Predicated region
    $region22: #{tpu_custom_call.1} parent=1 // pred_check
      _
    $region23: #{tpu_custom_call.1} parent=1 // pred_check_branch
      %26 = sbr.rel (0) target = $region25
    $region24: #{tpu_custom_call.1} parent=1 // pred_region
      _
    $region25: #{tpu_custom_call.1} parent=1 // pred_fallthru
      _
    // Predicated region
    $region26: #{tpu_custom_call.1} parent=1 // pred_check
      _
    $region27: #{tpu_custom_call.1} parent=1 // pred_check_branch
      %28 = sbr.rel (0) target = $region29
    $region28: #{tpu_custom_call.1} parent=1 // pred_region
      _
    $region29: #{tpu_custom_call.1} parent=1 // pred_fallthru
      _
    %v30 = vld [vmem:[%s0] sm:$0xf]
    %v31 = vld [vmem:[%s0 + $0x4] sm:$0xf]
    %v32 = vld [vmem:[%s1] sm:$0xf]
    %v33 = vld [vmem:[%s1 + $0x4] sm:$0xf]
    %v34 = vld [vmem:[%s1 + $0x8] sm:$0xf]
    %v35 = vld [vmem:[%s1 + $0xc] sm:$0xf]
    %v36 = vld [vmem:[%s2] sm:$0xff]
    %v37 = vld [vmem:[%s2 + $0x8] sm:$0xff]
    %v38 = vld [vmem:[%s2 + $0x10] sm:$0xff]
    %v39 = vld [vmem:[%s2 + $0x18] sm:$0xff]
    %41 = vset.pattern.permute.xlu0 0
    %42 = vperm.xlu0 %41, %v36
    %v43 = vpop.permute.xlu0 %42
    %46 = vset.pattern.permute.xlu0 0
    %47 = vperm.xlu0 %46, %v37
    %v48 = vpop.permute.xlu0 %47
    %51 = vset.pattern.permute.xlu0 0
    %52 = vperm.xlu0 %51, %v38
    %v53 = vpop.permute.xlu0 %52
    %56 = vset.pattern.permute.xlu0 0
    %57 = vperm.xlu0 %56, %v39
    %v58 = vpop.permute.xlu0 %57
    %v64 = vunpack.c.l.b16 %v32
    %v65 = vunpack.c.l.b16 %v33
    %v66 = vunpack.c.l.b16 %v34
    %v67 = vunpack.c.l.b16 %v35
    %v68 = vpack.c.b16 %v65, %v64
    %v69 = vpack.c.b16 %v67, %v66
    %v72 = vunpack.c.l.b16 %v30
    %v73 = vunpack.c.l.b16 %v31
    %v74 = vpack.c.b16 %v73, %v72
    %vm76 = vcmask 130048
    %v78 = vsel %vm76, %v68, 0
    %v81 = vsel %vm76, %v69, 0
    %83 = vmatprep.subr.bf16.mxu0 0
    %84 = vmatpush1.bf16.msra.mxu0 %v74
    %85 = vmatprep.subr.bf16.mxu0 0
    %86 = vmatpush1.bf16.msra.mxu0 0
    %87 = vmatprep.subr.bf16.mxu0 0
    %88 = vmatpush1.bf16.msra.mxu0 0
    %89 = vmatprep.subr.bf16.mxu0 0
    %90 = vmatpush1.bf16.msra.mxu0 0
    %91 = vmatprep.subr.bf16.mxu0 0
    %92 = vmatpush1.bf16.msra.mxu0 0
    %93 = vmatprep.subr.bf16.mxu0 0
    %94 = vmatpush1.bf16.msra.mxu0 0
    %95 = vmatprep.subr.bf16.mxu0 0
    %96 = vmatpush1.bf16.msra.mxu0 0
    %97 = vmatprep.subr.bf16.mxu0 0
    %98 = vmatpush1.bf16.msra.mxu0 0
    %99 = vmatprep.subr.bf16.mxu0 0
    %100 = vmatpush1.bf16.msra.mxu0 0
    %101 = vmatprep.subr.bf16.mxu0 0
    %102 = vmatpush1.bf16.msra.mxu0 0
    %103 = vmatprep.subr.bf16.mxu0 0
    %104 = vmatpush1.bf16.msra.mxu0 0
    %105 = vmatprep.subr.bf16.mxu0 0
    %106 = vmatpush1.bf16.msra.mxu0 0
    %107 = vmatprep.subr.bf16.mxu0 0
    %108 = vmatpush1.bf16.msra.mxu0 0
    %109 = vmatprep.subr.bf16.mxu0 0
    %110 = vmatpush1.bf16.msra.mxu0 0
    %111 = vmatprep.subr.bf16.mxu0 0
    %112 = vmatpush1.bf16.msra.mxu0 0
    %113 = vmatprep.subr.bf16.mxu0 0
    %114 = vmatpush1.bf16.msra.mxu0 0
    %115 = vmatprep.mubr.bf16.mxu0 0
    %116 = vmatmul.mubr.bf16.gmra.mrb[0].mxu0 %v78
    %v117 = vpop.f32.mrb[0].mxu0
    %v118 = vadd.f32 %v43, %v117
    %v119 = vpop.f32.mrb[0].mxu0
    %v120 = vpop.f32.mrb[0].mxu0
    %v121 = vadd.f32 %v48, %v120
    %v122 = vpop.f32.mrb[0].mxu0
    %123 = vmatprep.mubr.bf16.mxu0 0
    %124 = vmatmul.mubr.bf16.gmra.mrb[0].mxu0 %v81
    %v125 = vpop.f32.mrb[0].mxu0
    %v126 = vadd.f32 %v53, %v125
    %v127 = vpop.f32.mrb[0].mxu0
    %v128 = vpop.f32.mrb[0].mxu0
    %v129 = vadd.f32 %v58, %v128
    %v130 = vpop.f32.mrb[0].mxu0
    %131 = vdwg.mxu0
    %v132 = vpack.c.bf16 %v121, %v118
    %v133 = vpack.c.bf16 %v129, %v126
    %v134 = vtanh.bf16.pop %v132
    %v135 = vtanh.bf16.pop %v133
    %v136 = vld [vmem:[%s3] sm:$0xf]
    %v137 = vld [vmem:[%s3 + $0x4] sm:$0xf]
    %v138 = vld [vmem:[%s3 + $0x8] sm:$0xf]
    %v139 = vld [vmem:[%s3 + $0xc] sm:$0xf]
    %v140 = vld [vmem:[%s4] sm:$0xff]
    %v141 = vld [vmem:[%s4 + $0x8] sm:$0xff]
    %v142 = vld [vmem:[%s4 + $0x10] sm:$0xff]
    %v143 = vld [vmem:[%s4 + $0x18] sm:$0xff]
    %145 = vset.pattern.permute.xlu0 0
    %146 = vperm.xlu0 %145, %v140
    %v147 = vpop.permute.xlu0 %146
    %150 = vset.pattern.permute.xlu0 0
    %151 = vperm.xlu0 %150, %v141
    %v152 = vpop.permute.xlu0 %151
    %155 = vset.pattern.permute.xlu0 0
    %156 = vperm.xlu0 %155, %v142
    %v157 = vpop.permute.xlu0 %156
    %160 = vset.pattern.permute.xlu0 0
    %161 = vperm.xlu0 %160, %v143
    %v162 = vpop.permute.xlu0 %161
    %v168 = vunpack.c.l.b16 %v136
    %v169 = vunpack.c.l.b16 %v137
    %v170 = vunpack.c.l.b16 %v138
    %v171 = vunpack.c.l.b16 %v139
    %v172 = vpack.c.b16 %v169, %v168
    %v173 = vpack.c.b16 %v171, %v170
    %vm174 = vcmask 261120
    %v176 = vsel %vm174, %v172, 0
    %v179 = vsel %vm174, %v173, 0
    %181 = vmatprep.subr.bf16.mxu0 0
    %182 = vmatpush1.bf16.msra.mxu0 %v134
    %183 = vmatprep.subr.bf16.mxu0 0
    %184 = vmatpush1.bf16.msra.mxu0 %v135
    %185 = vmatprep.subr.bf16.mxu0 0
    %186 = vmatpush1.bf16.msra.mxu0 0
    %187 = vmatprep.subr.bf16.mxu0 0
    %188 = vmatpush1.bf16.msra.mxu0 0
    %189 = vmatprep.subr.bf16.mxu0 0
    %190 = vmatpush1.bf16.msra.mxu0 0
    %191 = vmatprep.subr.bf16.mxu0 0
    %192 = vmatpush1.bf16.msra.mxu0 0
    %193 = vmatprep.subr.bf16.mxu0 0
    %194 = vmatpush1.bf16.msra.mxu0 0
    %195 = vmatprep.subr.bf16.mxu0 0
    %196 = vmatpush1.bf16.msra.mxu0 0
    %197 = vmatprep.subr.bf16.mxu0 0
    %198 = vmatpush1.bf16.msra.mxu0 0
    %199 = vmatprep.subr.bf16.mxu0 0
    %200 = vmatpush1.bf16.msra.mxu0 0
    %201 = vmatprep.subr.bf16.mxu0 0
    %202 = vmatpush1.bf16.msra.mxu0 0
    %203 = vmatprep.subr.bf16.mxu0 0
    %204 = vmatpush1.bf16.msra.mxu0 0
    %205 = vmatprep.subr.bf16.mxu0 0
    %206 = vmatpush1.bf16.msra.mxu0 0
    %207 = vmatprep.subr.bf16.mxu0 0
    %208 = vmatpush1.bf16.msra.mxu0 0
    %209 = vmatprep.subr.bf16.mxu0 0
    %210 = vmatpush1.bf16.msra.mxu0 0
    %211 = vmatprep.subr.bf16.mxu0 0
    %212 = vmatpush1.bf16.msra.mxu0 0
    %213 = vmatprep.mubr.bf16.mxu0 0
    %214 = vmatmul.mubr.bf16.gmra.mrb[0].mxu0 %v176
    %v215 = vpop.f32.mrb[0].mxu0
    %v216 = vadd.f32 %v147, %v215
    %v217 = vpop.f32.mrb[0].mxu0
    %v218 = vpop.f32.mrb[0].mxu0
    %v219 = vadd.f32 %v152, %v218
    %v220 = vpop.f32.mrb[0].mxu0
    %221 = vmatprep.mubr.bf16.mxu0 0
    %222 = vmatmul.mubr.bf16.gmra.mrb[0].mxu0 %v179
    %v223 = vpop.f32.mrb[0].mxu0
    %v224 = vadd.f32 %v157, %v223
    %v225 = vpop.f32.mrb[0].mxu0
    %v226 = vpop.f32.mrb[0].mxu0
    %v227 = vadd.f32 %v162, %v226
    %v228 = vpop.f32.mrb[0].mxu0
    %229 = vdwg.mxu0
    %v230 = vpack.c.bf16 %v219, %v216
    %v231 = vpack.c.bf16 %v227, %v224
    %v232 = vtanh.bf16.pop %v230
    %v233 = vtanh.bf16.pop %v231
    %v234 = vld [vmem:[%s5] sm:$0x1]
    %v235 = vld [vmem:[#allocation2] sm:$0x1]
    %237 = vset.pattern.permute.xlu0 0
    %238 = vperm.xlu0 %237, %v235
    %v239 = vpop.permute.xlu0 %238
    %v241 = vlaneseq
    %v242 = vshrl.u32 %v241, 7
    %v243 = vsub.s32 0, %v242
    %v244 = vrot.slane %v239, %v243
    %v246 = vsel %vm174, %v234, 0
    %248 = vmatprep.subr.bf16.mxu0 0
    %249 = vmatpush1.bf16.msra.mxu0 %v232
    %250 = vmatprep.subr.bf16.mxu0 0
    %251 = vmatpush1.bf16.msra.mxu0 %v233
    %252 = vmatprep.subr.bf16.mxu0 0
    %253 = vmatpush1.bf16.msra.mxu0 0
    %254 = vmatprep.subr.bf16.mxu0 0
    %255 = vmatpush1.bf16.msra.mxu0 0
    %256 = vmatprep.subr.bf16.mxu0 0
    %257 = vmatpush1.bf16.msra.mxu0 0
    %258 = vmatprep.subr.bf16.mxu0 0
    %259 = vmatpush1.bf16.msra.mxu0 0
    %260 = vmatprep.subr.bf16.mxu0 0
    %261 = vmatpush1.bf16.msra.mxu0 0
    %262 = vmatprep.subr.bf16.mxu0 0
    %263 = vmatpush1.bf16.msra.mxu0 0
    %264 = vmatprep.subr.bf16.mxu0 0
    %265 = vmatpush1.bf16.msra.mxu0 0
    %266 = vmatprep.subr.bf16.mxu0 0
    %267 = vmatpush1.bf16.msra.mxu0 0
    %268 = vmatprep.subr.bf16.mxu0 0
    %269 = vmatpush1.bf16.msra.mxu0 0
    %270 = vmatprep.subr.bf16.mxu0 0
    %271 = vmatpush1.bf16.msra.mxu0 0
    %272 = vmatprep.subr.bf16.mxu0 0
    %273 = vmatpush1.bf16.msra.mxu0 0
    %274 = vmatprep.subr.bf16.mxu0 0
    %275 = vmatpush1.bf16.msra.mxu0 0
    %276 = vmatprep.subr.bf16.mxu0 0
    %277 = vmatpush1.bf16.msra.mxu0 0
    %278 = vmatprep.subr.bf16.mxu0 0
    %279 = vmatpush1.bf16.msra.mxu0 0
    %280 = vmatprep.mubr.bf16.mxu0 0
    %281 = vmatmul.mubr.bf16.gmra.mrb[0].mxu0 %v246
    %v282 = vpop.f32.mrb[0].mxu0
    %v283 = vadd.f32 %v244, %v282
    %v284 = vpop.f32.mrb[0].mxu0
    %v285 = vpop.f32.mrb[0].mxu0
    %v286 = vpop.f32.mrb[0].mxu0
    %287 = vdwg.mxu0
    %288 = vst [vmem:[#allocation3] sm:$0x1] %v283
    // Predicated region
    $region30: #{tpu_custom_call.1} parent=1 // pred_check
      _
    $region31: #{tpu_custom_call.1} parent=1 // pred_check_branch
      %290 = sbr.rel (0) target = $region33
    $region32: #{tpu_custom_call.1} parent=1 // pred_region
      %s292 = ssub.s32 16, 16
      %293 = vsyncadd [#allocation4], %s292
      %s295 = sshll.u32 [#allocation3], 4
      %s296 = int_to_ptr.vmem [resolvable:$true] %s295
      %298 = dma.vmem_to_hbm [thread:$0]  %s296, 16, %s7, [#allocation4]
    $region33: #{tpu_custom_call.1} parent=1 // pred_fallthru
      _
    // Predicated region
    $region34: #{tpu_custom_call.1} parent=1 // pred_check
      _
    $region35: #{tpu_custom_call.1} parent=1 // pred_check_branch
      %300 = sbr.rel (0) target = $region37
    $region36: #{tpu_custom_call.1} parent=1 // pred_region
      %301 = dma.done [#allocation4], 16
    $region37: #{tpu_custom_call.1} parent=1 // pred_fallthru
      _
    %302 = vsyncpa [#allocation4], 1

</llo_original>
